<compile_context>
chip_gen: v7x
topology: tpu7x:2x2x1
jax: 0.10.0
libtpu: 0.0.40
codegen_flags: <defaults>
</compile_context>

<pallas_src>
import jax
import jax.numpy as jnp
from jax.experimental import pallas as pl
from jax.experimental.pallas import tpu as pltpu


_LANE = 128          # lane width (last dim)
_BATCH_ALIGN = 16    # batch-tile alignment: covers f32 (8) and bf16 (16) sublane packing
_MXU_ROWS = 256      # MXU-filling row tile on v6e/v7x (also fine, 2 passes, on v5e)


def _cdiv(a, b):
    return (a + b - 1) // b


def _round_up(v, m):
    return _cdiv(v, m) * m


def qnet_kernel(x_ref, w1_ref, b1_ref, w2_ref, b2_ref, w3_ref, b3_ref, out_ref):
    # x: (TB, I) batch tile in its native dtype (cast in-kernel -> no extra XLA pass).
    # w*: (in, out) weights resident across grid steps (N lane-padded, except the
    #     final layer which keeps the real output width).
    # b*: (1, out) f32.
    # Computes y = relu(x @ W1 + b1) @ W2 + b2, then @ W3 + b3 (torch semantics with
    # pre-transposed weights).  Elementwise math stays f32 (v5e VPU has no bf16);
    # dot operands may be bf16 (MXU fast path) with f32 accumulation.
    x = x_ref[...].astype(w1_ref.dtype)

    h1 = jnp.dot(x, w1_ref[...], preferred_element_type=jnp.float32) + b1_ref[...]
    h1 = jnp.maximum(h1, 0.0)                                  # F.relu(linear1(x))

    h2 = jnp.dot(h1.astype(w2_ref.dtype), w2_ref[...],
                 preferred_element_type=jnp.float32) + b2_ref[...]
    # (no activation after linear2, per the reference forward)

    out = jnp.dot(h2.astype(w3_ref.dtype), w3_ref[...],
                  preferred_element_type=jnp.float32) + b3_ref[...]
    out_ref[...] = out.astype(out_ref.dtype)
    # TODO(synk): bias adds use a (1, N) broadcast; if this ever shows up in the
    # bundle, sublane-replicate biases at prepare time or fold them into the weights.


def init_params(key, input_size, hidden_size, hidden_size2, output_size):
    """Deterministic init matching nn.Linear's U(-1/sqrt(fan_in), 1/sqrt(fan_in)),
    stored in torch convention: w_i (out, in), b_i (out,)."""
    ks = jax.random.split(key, 6)

    def linear_init(kw, kb, fan_in, fan_out):
        bound = 1.0 / jnp.sqrt(jnp.float32(fan_in))
        w = jax.random.uniform(kw, (fan_out, fan_in), jnp.float32, -bound, bound)
        b = jax.random.uniform(kb, (fan_out,), jnp.float32, -bound, bound)
        return w, b

    w1, b1 = linear_init(ks[0], ks[1], input_size, hidden_size)
    w2, b2 = linear_init(ks[2], ks[3], hidden_size, hidden_size2)
    w3, b3 = linear_init(ks[4], ks[5], hidden_size2, output_size)
    return {"w1": w1, "b1": b1, "w2": w2, "b2": b2, "w3": w3, "b3": b3}


def prepare_params(params, *, matmul_dtype=jnp.float32):
    """One-time repack (hoisted out of the forward path).

    Kernel-side tensors (torch (out, in) -> (in, out)):
      * w1: (I,   H1p)  -- K left unpadded (x streams its real feature width),
                            N lane-padded to 128.
      * w2: (H1p, H2p)  -- K padded to match h1's padded width, N lane-padded.
      * w3: (H2p, O)    -- N left unpadded so the kernel writes only the real
                            output columns (no padded writeback + slice pass).
      * b*: (1, n) f32.
    Zero padding keeps the padded math identical on the real output columns.
    Unpadded f32 copies (w*_u / b*_u) are kept for the tiny-batch fast path.
    """
    w1, b1 = params["w1"], params["b1"]          # (H1, I), (H1,)
    w2, b2 = params["w2"], params["b2"]          # (H2, H1), (H2,)
    w3, b3 = params["w3"], params["b3"]          # (O,  H2), (O,)
    H1, I = w1.shape
    H2 = w2.shape[0]
    O = w3.shape[0]
    H1p = _round_up(H1, _LANE)
    H2p = _round_up(H2, _LANE)

    w1_p = jnp.zeros((I, H1p), matmul_dtype).at[:, :H1].set(w1.T.astype(matmul_dtype))
    w2_p = jnp.zeros((H1p, H2p), matmul_dtype).at[:H1, :H2].set(w2.T.astype(matmul_dtype))
    w3_p = jnp.zeros((H2p, O), matmul_dtype).at[:H2, :].set(w3.T.astype(matmul_dtype))
    b1_p = jnp.zeros((1, H1p), jnp.float32).at[:, :H1].set(b1.astype(jnp.float32))
    b2_p = jnp.zeros((1, H2p), jnp.float32).at[:, :H2].set(b2.astype(jnp.float32))
    b3_p = b3.astype(jnp.float32).reshape(1, O)

    return {
        "w1": w1_p, "b1": b1_p, "w2": w2_p, "b2": b2_p, "w3": w3_p, "b3": b3_p,
        "w1_u": w1.T.astype(jnp.float32), "b1_u": b1.astype(jnp.float32),
        "w2_u": w2.T.astype(jnp.float32), "b2_u": b2.astype(jnp.float32),
        "w3_u": w3.T.astype(jnp.float32), "b3_u": b3.astype(jnp.float32),
        "in_dim": int(I), "h1_dim": int(H1), "h2_dim": int(H2), "out_dim": int(O),
    }


def _choose_batch_tile(B, block_batch):
    if B < 2 * _MXU_ROWS:
        # Not enough rows to keep two cores busy -> single, minimally padded tile.
        return _round_up(max(B, 1), _BATCH_ALIGN)
    n_tiles = max(_cdiv(B, block_batch), 2)            # grid >= 2: megacore sharding
    tb = _round_up(_cdiv(B, n_tiles), _MXU_ROWS)       # MXU-filling 256-aligned tiles
    if _round_up(B, tb) - B > max(B // 8, _BATCH_ALIGN):
        # Near a tile boundary a 256-aligned tile would pad the batch by >12.5%;
        # fall back to sublane-aligned tiles to keep batch padding minimal.
        tb = _round_up(_cdiv(B, n_tiles), _BATCH_ALIGN)
    return tb


def _vmem_limit_bytes(TB, I, H1p, H2p, O, x_itemsize, w_itemsize):
    try:
        cap = int(pltpu.get_tpu_info().vmem_capacity_bytes)
    except Exception:
        cap = 64 * 1024 * 1024                  # conservative (v7x per-TC)
    cap = int(0.85 * cap)                        # headroom for Mosaic scratch/semaphores
    weight_bytes = ((I * H1p + H1p * H2p + H2p * O) * w_itemsize
                    + (H1p + H2p + O) * 4)
    stream_bytes = 3 * TB * I * x_itemsize + 2 * TB * O * 4
    live_bytes = 6 * TB * max(H1p, H2p) * 4      # f32 intermediates / spills
    budget = int(1.5 * (2 * weight_bytes + stream_bytes + live_bytes))
    return min(max(budget, 16 * 1024 * 1024), cap)


def _pallas_forward(xp, prep, TB, *, use_buffer_hints):
    Bp, I = xp.shape
    w1, b1 = prep["w1"], prep["b1"]
    w2, b2 = prep["w2"], prep["b2"]
    w3, b3 = prep["w3"], prep["b3"]
    H1p, H2p, O = w1.shape[1], w2.shape[1], w3.shape[1]
    w_itm = jnp.dtype(w1.dtype).itemsize
    x_itm = jnp.dtype(xp.dtype).itemsize
    grid = (Bp // TB,)

    # Resident (never re-fetched) blocks single-buffered; streamed x triple-buffered.
    res_kw = {"pipeline_mode": pl.Buffered(buffer_count=1)} if use_buffer_hints else {}
    x_kw = {"pipeline_mode": pl.Buffered(buffer_count=3)} if use_buffer_hints else {}

    # Cost estimate from the real (unpadded) dims so XLA's scheduler isn't misled.
    H1, H2, Od = prep["h1_dim"], prep["h2_dim"], prep["out_dim"]
    flops = 2 * Bp * (I * H1 + H1 * H2 + H2 * Od)
    bytes_accessed = (Bp * I * x_itm + Bp * Od * 4
                      + (I * H1 + H1 * H2 + H2 * Od) * w_itm
                      + (H1 + H2 + Od) * 4)
    cost = pl.CostEstimate(flops=flops, transcendentals=0,
                           bytes_accessed=bytes_accessed)

    return pl.pallas_call(
        qnet_kernel,
        out_shape=jax.ShapeDtypeStruct((Bp, O), jnp.float32),
        grid=grid,
        in_specs=[
            pl.BlockSpec((TB, I), lambda i: (i, 0), **x_kw),      # x: streamed tiles, K unpadded
            pl.BlockSpec((I, H1p), lambda i: (0, 0), **res_kw),   # weights/biases: resident
            pl.BlockSpec((1, H1p), lambda i: (0, 0), **res_kw),
            pl.BlockSpec((H1p, H2p), lambda i: (0, 0), **res_kw),
            pl.BlockSpec((1, H2p), lambda i: (0, 0), **res_kw),
            pl.BlockSpec((H2p, O), lambda i: (0, 0), **res_kw),
            pl.BlockSpec((1, O), lambda i: (0, 0), **res_kw),
        ],
        out_specs=pl.BlockSpec((TB, O), lambda i: (i, 0)),        # real-width writeback
        compiler_params=pltpu.CompilerParams(
            dimension_semantics=("parallel",),                    # batch tiles across TCs
            vmem_limit_bytes=_vmem_limit_bytes(TB, I, H1p, H2p, O, x_itm, w_itm),
        ),
        cost_estimate=cost,
    )(xp, w1, b1, w2, b2, w3, b3)


def linear_qnet_forward(x, prep, *, block_batch=512, min_pallas_batch=64):
    """x: (B, input_size).  prep: output of prepare_params().  Returns (B, output_size) f32."""
    B, I = x.shape
    assert I == prep["in_dim"], "input feature size mismatch"

    if B < min_pallas_batch:
        # Tiny-batch fast path (the actual Q-net inference case, B~1-2):
        # pallas_call dispatch + pipeline prologue dominate at this size.
        h1 = jnp.maximum(x.astype(jnp.float32) @ prep["w1_u"] + prep["b1_u"], 0.0)
        h2 = h1 @ prep["w2_u"] + prep["b2_u"]
        return h2 @ prep["w3_u"] + prep["b3_u"]

    TB = _choose_batch_tile(B, block_batch)
    Bp = _round_up(B, TB)
    # Only the batch (row) dim is ever padded, and only when needed; features stay unpadded.
    xp = x if Bp == B else jnp.pad(x, ((0, Bp - B), (0, 0)))

    try:
        out = _pallas_forward(xp, prep, TB, use_buffer_hints=True)
    except Exception:
        # pl.Buffered pipeline hints are advisory; fall back to default double-buffering
        # if the installed JAX/Mosaic rejects them.
        out = _pallas_forward(xp, prep, TB, use_buffer_hints=False)

    return out if Bp == B else out[:B]

    # TODO(synk): if hidden sizes ever scale to ~4k, add a K/N reduction grid axis
    # ("arbitrary") with a VMEM accumulator instead of keeping whole weights resident.


if __name__ == "__main__":
    # Shapes consistent with the module: input=16, hidden=32, hidden2=32, output=4.
    I, H1, H2, O = 16, 32, 32, 4

    key = jax.random.PRNGKey(0)
    k_xs, k_xb, k_p = jax.random.split(key, 3)

    params = init_params(k_p, I, H1, H2, O)

    def torch_ref(x):
        # Pure-JAX reference (torch semantics: x @ W.T + b).
        h1 = jnp.maximum(x @ params["w1"].T + params["b1"], 0.0)
        h2 = h1 @ params["w2"].T + params["b2"]
        return h2 @ params["w3"].T + params["b3"]

    prep = prepare_params(params)                       # f32 matmul path

    # 1) Actual Q-net-sized call (batch=2): tiny-batch fast path (no Pallas dispatch).
    x_small = jax.random.normal(k_xs, (2, I), jnp.float32)
    out_small = jax.block_until_ready(linear_qnet_forward(x_small, prep))
    assert out_small.shape == (2, O)
    assert jnp.allclose(out_small, torch_ref(x_small), atol=1e-5, rtol=1e-5)

    # 2) Same tiny batch forced through the Pallas kernel (covers the batch-pad path).
    out_small_k = jax.block_until_ready(
        linear_qnet_forward(x_small, prep, min_pallas_batch=0))
    assert out_small_k.shape == (2, O)
    assert jnp.allclose(out_small_k, torch_ref(x_small), atol=1e-5, rtol=1e-5)

    # 3) Training-sized batch through the Pallas kernel (grid >= 2, streamed tiles).
    x_big = jax.random.normal(k_xb, (512, I), jnp.float32)
    out_big = jax.block_until_ready(linear_qnet_forward(x_big, prep))
    assert out_big.shape == (512, O)
    assert jnp.allclose(out_big, torch_ref(x_big), atol=1e-5, rtol=1e-5)

    # 4) bf16 matmul-operand path (MXU fast path; f32 accumulate, looser tolerance).
    prep_bf16 = prepare_params(params, matmul_dtype=jnp.bfloat16)
    out_bf16 = jax.block_until_ready(linear_qnet_forward(x_big, prep_bf16))
    assert out_bf16.shape == (512, O)
    assert jnp.allclose(out_bf16, torch_ref(x_big), atol=1e-1, rtol=1e-1)

    print("KERNEL_OK")
</pallas_src>

<mosaic_0001>
module attributes {stable_mosaic.version = 11 : i64} {
  func.func @qnet_kernel(%arg0: i32, %arg1: memref<16x16xf32, #tpu.memory_space<vmem>>, %arg2: memref<16x128xf32, #tpu.memory_space<vmem>>, %arg3: memref<1x128xf32, #tpu.memory_space<vmem>>, %arg4: memref<128x128xf32, #tpu.memory_space<vmem>>, %arg5: memref<1x128xf32, #tpu.memory_space<vmem>>, %arg6: memref<128x4xf32, #tpu.memory_space<vmem>>, %arg7: memref<1x4xf32, #tpu.memory_space<vmem>>, %arg8: memref<16x4xf32, #tpu.memory_space<vmem>>) attributes {dimension_semantics = [#tpu.dimension_semantics<parallel>], iteration_bounds = array<i64: 1>, scalar_prefetch = 0 : i64, scratch_operands = 0 : i64, tpu.core_type = #tpu.core_type<tc>, window_params = [{transform_indices = @transform_0, window_bounds = array<i64: 16, 16>}, {pipeline_mode = #tpu.pipeline_mode<synchronous>, transform_indices = @transform_1, window_bounds = array<i64: 16, 128>}, {pipeline_mode = #tpu.pipeline_mode<synchronous>, transform_indices = @transform_2, window_bounds = array<i64: 1, 128>}, {pipeline_mode = #tpu.pipeline_mode<synchronous>, transform_indices = @transform_3, window_bounds = array<i64: 128, 128>}, {pipeline_mode = #tpu.pipeline_mode<synchronous>, transform_indices = @transform_4, window_bounds = array<i64: 1, 128>}, {pipeline_mode = #tpu.pipeline_mode<synchronous>, transform_indices = @transform_5, window_bounds = array<i64: 128, 4>}, {pipeline_mode = #tpu.pipeline_mode<synchronous>, transform_indices = @transform_6, window_bounds = array<i64: 1, 4>}, {transform_indices = @transform_7, window_bounds = array<i64: 16, 4>}]} {
    %c0 = arith.constant 0 : index
    %c0_0 = arith.constant 0 : index
    %0 = vector.load %arg1[%c0, %c0_0] : memref<16x16xf32, #tpu.memory_space<vmem>>, vector<16x16xf32>
    %c0_1 = arith.constant 0 : index
    %c0_2 = arith.constant 0 : index
    %1 = vector.load %arg2[%c0_1, %c0_2] : memref<16x128xf32, #tpu.memory_space<vmem>>, vector<16x128xf32>
    %cst = arith.constant dense<0.000000e+00> : vector<16x128xf32>
    %2 = tpu.matmul %0, %1, %cst {dimension_numbers = #tpu.dot_dimension_numbers<[1], [0], [0], [1], [0, 0, 1, 1], [], []>} : vector<16x16xf32>, vector<16x128xf32>, vector<16x128xf32> -> vector<16x128xf32>
    %c0_3 = arith.constant 0 : index
    %c0_4 = arith.constant 0 : index
    %3 = vector.load %arg3[%c0_3, %c0_4] : memref<1x128xf32, #tpu.memory_space<vmem>>, vector<1x128xf32>
    %4 = vector.broadcast %3 : vector<1x128xf32> to vector<16x128xf32>
    %5 = arith.addf %2, %4 : vector<16x128xf32>
    %cst_5 = arith.constant 0.000000e+00 : f32
    %6 = vector.broadcast %cst_5 : f32 to vector<16x128xf32>
    %7 = arith.maximumf %5, %6 : vector<16x128xf32>
    %c0_6 = arith.constant 0 : index
    %c0_7 = arith.constant 0 : index
    %8 = vector.load %arg4[%c0_6, %c0_7] : memref<128x128xf32, #tpu.memory_space<vmem>>, vector<128x128xf32>
    %cst_8 = arith.constant dense<0.000000e+00> : vector<16x128xf32>
    %9 = tpu.matmul %7, %8, %cst_8 {dimension_numbers = #tpu.dot_dimension_numbers<[1], [0], [0], [1], [0, 0, 1, 1], [], []>} : vector<16x128xf32>, vector<128x128xf32>, vector<16x128xf32> -> vector<16x128xf32>
    %c0_9 = arith.constant 0 : index
    %c0_10 = arith.constant 0 : index
    %10 = vector.load %arg5[%c0_9, %c0_10] : memref<1x128xf32, #tpu.memory_space<vmem>>, vector<1x128xf32>
    %11 = vector.broadcast %10 : vector<1x128xf32> to vector<16x128xf32>
    %12 = arith.addf %9, %11 : vector<16x128xf32>
    %c0_11 = arith.constant 0 : index
    %c0_12 = arith.constant 0 : index
    %13 = vector.load %arg6[%c0_11, %c0_12] : memref<128x4xf32, #tpu.memory_space<vmem>>, vector<128x4xf32>
    %cst_13 = arith.constant dense<0.000000e+00> : vector<16x4xf32>
    %14 = tpu.matmul %12, %13, %cst_13 {dimension_numbers = #tpu.dot_dimension_numbers<[1], [0], [0], [1], [0, 0, 1, 1], [], []>} : vector<16x128xf32>, vector<128x4xf32>, vector<16x4xf32> -> vector<16x4xf32>
    %c0_14 = arith.constant 0 : index
    %c0_15 = arith.constant 0 : index
    %15 = vector.load %arg7[%c0_14, %c0_15] : memref<1x4xf32, #tpu.memory_space<vmem>>, vector<1x4xf32>
    %16 = vector.broadcast %15 : vector<1x4xf32> to vector<16x4xf32>
    %17 = arith.addf %14, %16 : vector<16x4xf32>
    %c0_16 = arith.constant 0 : index
    %c0_17 = arith.constant 0 : index
    %18 = vector.load %arg8[%c0_16, %c0_17] : memref<16x4xf32, #tpu.memory_space<vmem>>, vector<16x4xf32>
    tpu.vector_store %arg8[%c0_16, %c0_17], %17 {strides = array<i32>} : memref<16x4xf32, #tpu.memory_space<vmem>>, vector<16x4xf32>,
    return
  }
  func.func @transform_0(%arg0: i32) -> (i32, i32) {
    %c0_i32 = arith.constant 0 : i32
    %c0_i32_0 = arith.constant 0 : i32
    return %arg0, %c0_i32 : i32, i32
  }
  func.func @transform_1(%arg0: i32) -> (i32, i32) {
    %c0_i32 = arith.constant 0 : i32
    %c0_i32_0 = arith.constant 0 : i32
    %c0_i32_1 = arith.constant 0 : i32
    return %c0_i32, %c0_i32_0 : i32, i32
  }
  func.func @transform_2(%arg0: i32) -> (i32, i32) {
    %c0_i32 = arith.constant 0 : i32
    %c0_i32_0 = arith.constant 0 : i32
    %c0_i32_1 = arith.constant 0 : i32
    return %c0_i32, %c0_i32_0 : i32, i32
  }
  func.func @transform_3(%arg0: i32) -> (i32, i32) {
    %c0_i32 = arith.constant 0 : i32
    %c0_i32_0 = arith.constant 0 : i32
    %c0_i32_1 = arith.constant 0 : i32
    return %c0_i32, %c0_i32_0 : i32, i32
  }
  func.func @transform_4(%arg0: i32) -> (i32, i32) {
    %c0_i32 = arith.constant 0 : i32
    %c0_i32_0 = arith.constant 0 : i32
    %c0_i32_1 = arith.constant 0 : i32
    return %c0_i32, %c0_i32_0 : i32, i32
  }
  func.func @transform_5(%arg0: i32) -> (i32, i32) {
    %c0_i32 = arith.constant 0 : i32
    %c0_i32_0 = arith.constant 0 : i32
    %c0_i32_1 = arith.constant 0 : i32
    return %c0_i32, %c0_i32_0 : i32, i32
  }
  func.func @transform_6(%arg0: i32) -> (i32, i32) {
    %c0_i32 = arith.constant 0 : i32
    %c0_i32_0 = arith.constant 0 : i32
    %c0_i32_1 = arith.constant 0 : i32
    return %c0_i32, %c0_i32_0 : i32, i32
  }
  func.func @transform_7(%arg0: i32) -> (i32, i32) {
    %c0_i32 = arith.constant 0 : i32
    %c0_i32_0 = arith.constant 0 : i32
    return %arg0, %c0_i32 : i32, i32
  }
}

</mosaic_0001>

<llo_original>
// kernel: tpu_custom_call.1
$region0: #{tpu_custom_call.1}
  #allocation0 [shape = 'u32[]', space=smem, size = 0x4, offset = 0x4, fixed_abs, tag = 'smem constant byte address 0x4 - core index']
  #allocation1 [shape = 'u32[144,128]{1,0:T(1,128)}', space=vmem, size = 0x12000, scoped, tag = 'internal scratch']
  %s0 = inlined_call_operand.hbm [shape: f32[16,16], index: 0, kind: input, shape index: {}]
  %s1 = inlined_call_operand.hbm [shape: f32[16,128], index: 1, kind: input, shape index: {}]
  %s2 = inlined_call_operand.vmem [shape: f32[1,128], index: 2, kind: input, shape index: {}]
  %s3 = inlined_call_operand.vmem [shape: f32[128,128], index: 3, kind: input, shape index: {}]
  %s4 = inlined_call_operand.vmem [shape: f32[1,128], index: 4, kind: input, shape index: {}]
  %s5 = inlined_call_operand.vmem [shape: f32[128,4], index: 5, kind: input, shape index: {}]
  %s6 = inlined_call_operand.vmem [shape: f32[1,4], index: 6, kind: input, shape index: {}]
  %s7 = inlined_call_operand.vmem [shape: f32[16,4], index: 7, kind: output, shape index: {}]
  %s8 = sld [smem:[#allocation0]]
  $region46: #{tpu_custom_call.1} parent=0
    _
  %s10 = ssub.s32 1, %s8
  %s11 = scalar_select 0, %s10, %s8
  $region1: #{tpu_custom_call.1} parent=0
    #allocation2 [shape = 'u8[8192]{0}', space=vmem, size = 0x2000, scoped, tag = 'input window, operand 0, single buffered']
    #allocation3 [shape = 's32[1]{0}', space=sflag, size = 0x4, scoped, tag = 'scoped memory for tpu_custom_call.1']
    #allocation4 [shape = 'u8[8192]{0}', space=vmem, size = 0x2000, scoped, tag = 'input window, operand 1, single buffered']
    #allocation5 [shape = 's32[1]{0}', space=sflag, size = 0x4, scoped, tag = 'scoped memory for tpu_custom_call.1']
    %12 = vsyncpa [#allocation3], 0
    %13 = vsyncpa [#allocation5], 0
    // Predicated region
    $region2: #{tpu_custom_call.1} parent=1 // pred_check
      _
    $region3: #{tpu_custom_call.1} parent=1 // pred_check_branch
      %15 = sbr.rel (0) target = $region5
    $region4: #{tpu_custom_call.1} parent=1 // pred_region
      %s17 = ssub.s32 256, 256
      %18 = vsyncadd [#allocation3], %s17
      %s19 = sshll.u32 [#allocation2], 4
      %s20 = int_to_ptr.vmem [resolvable:$true] %s19
      %25 = dma.hbm_to_vmem [thread:$0]  %s0, 256, %s20, [#allocation3], 128, 128, 8
    $region5: #{tpu_custom_call.1} parent=1 // pred_fallthru
      _
    // Predicated region
    $region6: #{tpu_custom_call.1} parent=1 // pred_check
      _
    $region7: #{tpu_custom_call.1} parent=1 // pred_check_branch
      %27 = sbr.rel (0) target = $region9
    $region8: #{tpu_custom_call.1} parent=1 // pred_region
      %s29 = ssub.s32 256, 256
      %30 = vsyncadd [#allocation5], %s29
      %s31 = sshll.u32 [#allocation4], 4
      %s32 = int_to_ptr.vmem [resolvable:$true] %s31
      %37 = dma.hbm_to_vmem [thread:$0]  %s1, 256, %s32, [#allocation5], 128, 128, 8
    $region9: #{tpu_custom_call.1} parent=1 // pred_fallthru
      _
    // Predicated region
    $region10: #{tpu_custom_call.1} parent=1 // pred_check
      _
    $region11: #{tpu_custom_call.1} parent=1 // pred_check_branch
      %39 = sbr.rel (0) target = $region13
    $region12: #{tpu_custom_call.1} parent=1 // pred_region
      _
    $region13: #{tpu_custom_call.1} parent=1 // pred_fallthru
      _
    // Predicated region
    $region14: #{tpu_custom_call.1} parent=1 // pred_check
      _
    $region15: #{tpu_custom_call.1} parent=1 // pred_check_branch
      %41 = sbr.rel (0) target = $region17
    $region16: #{tpu_custom_call.1} parent=1 // pred_region
      _
    $region17: #{tpu_custom_call.1} parent=1 // pred_fallthru
      _
    // Predicated region
    $region18: #{tpu_custom_call.1} parent=1 // pred_check
      _
    $region19: #{tpu_custom_call.1} parent=1 // pred_check_branch
      %43 = sbr.rel (0) target = $region21
    $region20: #{tpu_custom_call.1} parent=1 // pred_region
      _
    $region21: #{tpu_custom_call.1} parent=1 // pred_fallthru
      _
    // Predicated region
    $region22: #{tpu_custom_call.1} parent=1 // pred_check
      _
    $region23: #{tpu_custom_call.1} parent=1 // pred_check_branch
      %45 = sbr.rel (0) target = $region25
    $region24: #{tpu_custom_call.1} parent=1 // pred_region
      _
    $region25: #{tpu_custom_call.1} parent=1 // pred_fallthru
      _
    // Predicated region
    $region26: #{tpu_custom_call.1} parent=1 // pred_check
      _
    $region27: #{tpu_custom_call.1} parent=1 // pred_check_branch
      %47 = sbr.rel (0) target = $region29
    $region28: #{tpu_custom_call.1} parent=1 // pred_region
      _
    $region29: #{tpu_custom_call.1} parent=1 // pred_fallthru
      _
    // Predicated region
    $region30: #{tpu_custom_call.1} parent=1 // pred_check
      _
    $region31: #{tpu_custom_call.1} parent=1 // pred_check_branch
      %49 = sbr.rel (0) target = $region33
    $region32: #{tpu_custom_call.1} parent=1 // pred_region
      %50 = dma.done [#allocation3], 256
    $region33: #{tpu_custom_call.1} parent=1 // pred_fallthru
      _
    // Predicated region
    $region34: #{tpu_custom_call.1} parent=1 // pred_check
      _
    $region35: #{tpu_custom_call.1} parent=1 // pred_check_branch
      %52 = sbr.rel (0) target = $region37
    $region36: #{tpu_custom_call.1} parent=1 // pred_region
      %53 = dma.done [#allocation5], 256
    $region37: #{tpu_custom_call.1} parent=1 // pred_fallthru
      _
    %v54 = vld [vmem:[#allocation2] sm:$0xff]
    %v55 = vld [vmem:[#allocation2 + $0x8] sm:$0xff]
    %v56 = vld [vmem:[#allocation4] sm:$0xff]
    %v57 = vld [vmem:[#allocation4 + $0x8] sm:$0xff]
    %v58 = vld [vmem:[%s2] sm:$0x1]
    %v60 = vlaneseq
    %v61 = vshrl.u32 %v60, 7
    %v62 = vsub.s32 0, %v61
    %v63 = vrot.slane %v58, %v62
    %vm65 = vcmask 130048
    %v67 = vsel %vm65, %v54, 0
    %v70 = vsel %vm65, %v55, 0
    %72 = vmatprep.subr.mxu0 0.0
    %73 = vmatpush1.msra.mxu0 %v56
    %74 = vmatprep.subr.mxu0 0.0
    %75 = vmatpush1.msra.mxu0 %v57
    %76 = vmatprep.subr.mxu0 0.0
    %77 = vmatpush1.msra.mxu0 0.0
    %78 = vmatprep.subr.mxu0 0.0
    %79 = vmatpush1.msra.mxu0 0.0
    %80 = vmatprep.subr.mxu0 0.0
    %81 = vmatpush1.msra.mxu0 0.0
    %82 = vmatprep.subr.mxu0 0.0
    %83 = vmatpush1.msra.mxu0 0.0
    %84 = vmatprep.subr.mxu0 0.0
    %85 = vmatpush1.msra.mxu0 0.0
    %86 = vmatprep.subr.mxu0 0.0
    %87 = vmatpush1.msra.mxu0 0.0
    %88 = vmatprep.subr.mxu0 0.0
    %89 = vmatpush1.msra.mxu0 0.0
    %90 = vmatprep.subr.mxu0 0.0
    %91 = vmatpush1.msra.mxu0 0.0
    %92 = vmatprep.subr.mxu0 0.0
    %93 = vmatpush1.msra.mxu0 0.0
    %94 = vmatprep.subr.mxu0 0.0
    %95 = vmatpush1.msra.mxu0 0.0
    %96 = vmatprep.subr.mxu0 0.0
    %97 = vmatpush1.msra.mxu0 0.0
    %98 = vmatprep.subr.mxu0 0.0
    %99 = vmatpush1.msra.mxu0 0.0
    %100 = vmatprep.subr.mxu0 0.0
    %101 = vmatpush1.msra.mxu0 0.0
    %102 = vmatprep.subr.mxu0 0.0
    %103 = vmatpush1.msra.mxu0 0.0
    %104 = vmatprep.subr.mxu0 0.0
    %105 = vmatpush1.msra.mxu0 0.0
    %106 = vmatprep.subr.mxu0 0.0
    %107 = vmatpush1.msra.mxu0 0.0
    %108 = vmatprep.subr.mxu0 0.0
    %109 = vmatpush1.msra.mxu0 0.0
    %110 = vmatprep.subr.mxu0 0.0
    %111 = vmatpush1.msra.mxu0 0.0
    %112 = vmatprep.subr.mxu0 0.0
    %113 = vmatpush1.msra.mxu0 0.0
    %114 = vmatprep.subr.mxu0 0.0
    %115 = vmatpush1.msra.mxu0 0.0
    %116 = vmatprep.subr.mxu0 0.0
    %117 = vmatpush1.msra.mxu0 0.0
    %118 = vmatprep.subr.mxu0 0.0
    %119 = vmatpush1.msra.mxu0 0.0
    %120 = vmatprep.subr.mxu0 0.0
    %121 = vmatpush1.msra.mxu0 0.0
    %122 = vmatprep.subr.mxu0 0.0
    %123 = vmatpush1.msra.mxu0 0.0
    %124 = vmatprep.subr.mxu0 0.0
    %125 = vmatpush1.msra.mxu0 0.0
    %126 = vmatprep.subr.mxu0 0.0
    %127 = vmatpush1.msra.mxu0 0.0
    %128 = vmatprep.subr.mxu0 0.0
    %129 = vmatpush1.msra.mxu0 0.0
    %130 = vmatprep.subr.mxu0 0.0
    %131 = vmatpush1.msra.mxu0 0.0
    %132 = vmatprep.subr.mxu0 0.0
    %133 = vmatpush1.msra.mxu0 0.0
    %134 = vmatprep.subr.mxu0 0.0
    %135 = vmatpush1.msra.mxu0 0.0
    %136 = vmatprep.mubr.f32.mxu0 0.0
    %137 = vmatmul.mubr.f32.gmra.mrb[0].mxu0 %v67
    %v138 = vpop.f32.mrb[0].mxu0
    %v139 = vadd.f32 %v63, %v138
    %v140 = vpop.f32.mrb[0].mxu0
    %141 = vmatprep.mubr.f32.mxu0 0.0
    %142 = vmatmul.mubr.f32.gmra.mrb[0].mxu0 %v70
    %v143 = vpop.f32.mrb[0].mxu0
    %v144 = vadd.f32 %v63, %v143
    %v145 = vpop.f32.mrb[0].mxu0
    %146 = vdwg.mxu0
    %v147 = vmax.f32 %v139, 0.0
    %v148 = vmax.f32 %v144, 0.0
    %v149 = vld [vmem:[%s3] sm:$0xff]
    %v150 = vld [vmem:[%s3 + $0x8] sm:$0xff]
    %v151 = vld [vmem:[%s3 + $0x10] sm:$0xff]
    %v152 = vld [vmem:[%s3 + $0x18] sm:$0xff]
    %v153 = vld [vmem:[%s3 + $0x20] sm:$0xff]
    %v154 = vld [vmem:[%s3 + $0x28] sm:$0xff]
    %v155 = vld [vmem:[%s3 + $0x30] sm:$0xff]
    %v156 = vld [vmem:[%s3 + $0x38] sm:$0xff]
    %v157 = vld [vmem:[%s3 + $0x40] sm:$0xff]
    %v158 = vld [vmem:[%s3 + $0x48] sm:$0xff]
    %v159 = vld [vmem:[%s3 + $0x50] sm:$0xff]
    %v160 = vld [vmem:[%s3 + $0x58] sm:$0xff]
    %v161 = vld [vmem:[%s3 + $0x60] sm:$0xff]
    %v162 = vld [vmem:[%s3 + $0x68] sm:$0xff]
    %v163 = vld [vmem:[%s3 + $0x70] sm:$0xff]
    %v164 = vld [vmem:[%s3 + $0x78] sm:$0xff]
    %v165 = vld [vmem:[%s4] sm:$0x1]
    %v167 = vlaneseq
    %v168 = vshrl.u32 %v167, 7
    %v169 = vsub.s32 0, %v168
    %v170 = vrot.slane %v165, %v169
    %172 = vmatprep.subr.mxu0 0.0
    %173 = vmatpush1.msra.mxu0 %v149
    %174 = vmatprep.subr.mxu0 0.0
    %175 = vmatpush1.msra.mxu0 %v150
    %176 = vmatprep.subr.mxu0 0.0
    %177 = vmatpush1.msra.mxu0 %v151
    %178 = vmatprep.subr.mxu0 0.0
    %179 = vmatpush1.msra.mxu0 %v152
    %180 = vmatprep.subr.mxu0 0.0
    %181 = vmatpush1.msra.mxu0 %v153
    %182 = vmatprep.subr.mxu0 0.0
    %183 = vmatpush1.msra.mxu0 %v154
    %184 = vmatprep.subr.mxu0 0.0
    %185 = vmatpush1.msra.mxu0 %v155
    %186 = vmatprep.subr.mxu0 0.0
    %187 = vmatpush1.msra.mxu0 %v156
    %188 = vmatprep.subr.mxu0 0.0
    %189 = vmatpush1.msra.mxu0 %v157
    %190 = vmatprep.subr.mxu0 0.0
    %191 = vmatpush1.msra.mxu0 %v158
    %192 = vmatprep.subr.mxu0 0.0
    %193 = vmatpush1.msra.mxu0 %v159
    %194 = vmatprep.subr.mxu0 0.0
    %195 = vmatpush1.msra.mxu0 %v160
    %196 = vmatprep.subr.mxu0 0.0
    %197 = vmatpush1.msra.mxu0 %v161
    %198 = vmatprep.subr.mxu0 0.0
    %199 = vmatpush1.msra.mxu0 %v162
    %200 = vmatprep.subr.mxu0 0.0
    %201 = vmatpush1.msra.mxu0 %v163
    %202 = vmatprep.subr.mxu0 0.0
    %203 = vmatpush1.msra.mxu0 %v164
    %204 = vmatprep.subr.mxu0 0.0
    %205 = vmatpush1.msra.mxu0 0.0
    %206 = vmatprep.subr.mxu0 0.0
    %207 = vmatpush1.msra.mxu0 0.0
    %208 = vmatprep.subr.mxu0 0.0
    %209 = vmatpush1.msra.mxu0 0.0
    %210 = vmatprep.subr.mxu0 0.0
    %211 = vmatpush1.msra.mxu0 0.0
    %212 = vmatprep.subr.mxu0 0.0
    %213 = vmatpush1.msra.mxu0 0.0
    %214 = vmatprep.subr.mxu0 0.0
    %215 = vmatpush1.msra.mxu0 0.0
    %216 = vmatprep.subr.mxu0 0.0
    %217 = vmatpush1.msra.mxu0 0.0
    %218 = vmatprep.subr.mxu0 0.0
    %219 = vmatpush1.msra.mxu0 0.0
    %220 = vmatprep.subr.mxu0 0.0
    %221 = vmatpush1.msra.mxu0 0.0
    %222 = vmatprep.subr.mxu0 0.0
    %223 = vmatpush1.msra.mxu0 0.0
    %224 = vmatprep.subr.mxu0 0.0
    %225 = vmatpush1.msra.mxu0 0.0
    %226 = vmatprep.subr.mxu0 0.0
    %227 = vmatpush1.msra.mxu0 0.0
    %228 = vmatprep.subr.mxu0 0.0
    %229 = vmatpush1.msra.mxu0 0.0
    %230 = vmatprep.subr.mxu0 0.0
    %231 = vmatpush1.msra.mxu0 0.0
    %232 = vmatprep.subr.mxu0 0.0
    %233 = vmatpush1.msra.mxu0 0.0
    %234 = vmatprep.subr.mxu0 0.0
    %235 = vmatpush1.msra.mxu0 0.0
    %236 = vmatprep.mubr.f32.mxu0 0.0
    %237 = vmatmul.mubr.f32.gmra.mrb[0].mxu0 %v147
    %v238 = vpop.f32.mrb[0].mxu0
    %v239 = vadd.f32 %v170, %v238
    %v240 = vpop.f32.mrb[0].mxu0
    %241 = vmatprep.mubr.f32.mxu0 0.0
    %242 = vmatmul.mubr.f32.gmra.mrb[0].mxu0 %v148
    %v243 = vpop.f32.mrb[0].mxu0
    %v244 = vadd.f32 %v170, %v243
    %v245 = vpop.f32.mrb[0].mxu0
    %246 = vdwg.mxu0
    %v247 = vld [vmem:[%s5] sm:$0xff]
    %v248 = vld [vmem:[%s5 + $0x8] sm:$0xff]
    %v249 = vld [vmem:[%s5 + $0x10] sm:$0xff]
    %v250 = vld [vmem:[%s5 + $0x18] sm:$0xff]
    %v251 = vld [vmem:[%s5 + $0x20] sm:$0xff]
    %v252 = vld [vmem:[%s5 + $0x28] sm:$0xff]
    %v253 = vld [vmem:[%s5 + $0x30] sm:$0xff]
    %v254 = vld [vmem:[%s5 + $0x38] sm:$0xff]
    %v255 = vld [vmem:[%s5 + $0x40] sm:$0xff]
    %v256 = vld [vmem:[%s5 + $0x48] sm:$0xff]
    %v257 = vld [vmem:[%s5 + $0x50] sm:$0xff]
    %v258 = vld [vmem:[%s5 + $0x58] sm:$0xff]
    %v259 = vld [vmem:[%s5 + $0x60] sm:$0xff]
    %v260 = vld [vmem:[%s5 + $0x68] sm:$0xff]
    %v261 = vld [vmem:[%s5 + $0x70] sm:$0xff]
    %v262 = vld [vmem:[%s5 + $0x78] sm:$0xff]
    %v263 = vld [vmem:[%s6] sm:$0x1]
    %v265 = vlaneseq
    %v266 = vshrl.u32 %v265, 7
    %v267 = vsub.s32 0, %v266
    %v268 = vrot.slane %v263, %v267
    %270 = vmatprep.subr.mxu0 0.0
    %271 = vmatpush1.msra.mxu0 %v247
    %272 = vmatprep.subr.mxu0 0.0
    %273 = vmatpush1.msra.mxu0 %v248
    %274 = vmatprep.subr.mxu0 0.0
    %275 = vmatpush1.msra.mxu0 %v249
    %276 = vmatprep.subr.mxu0 0.0
    %277 = vmatpush1.msra.mxu0 %v250
    %278 = vmatprep.subr.mxu0 0.0
    %279 = vmatpush1.msra.mxu0 %v251
    %280 = vmatprep.subr.mxu0 0.0
    %281 = vmatpush1.msra.mxu0 %v252
    %282 = vmatprep.subr.mxu0 0.0
    %283 = vmatpush1.msra.mxu0 %v253
    %284 = vmatprep.subr.mxu0 0.0
    %285 = vmatpush1.msra.mxu0 %v254
    %286 = vmatprep.subr.mxu0 0.0
    %287 = vmatpush1.msra.mxu0 %v255
    %288 = vmatprep.subr.mxu0 0.0
    %289 = vmatpush1.msra.mxu0 %v256
    %290 = vmatprep.subr.mxu0 0.0
    %291 = vmatpush1.msra.mxu0 %v257
    %292 = vmatprep.subr.mxu0 0.0
    %293 = vmatpush1.msra.mxu0 %v258
    %294 = vmatprep.subr.mxu0 0.0
    %295 = vmatpush1.msra.mxu0 %v259
    %296 = vmatprep.subr.mxu0 0.0
    %297 = vmatpush1.msra.mxu0 %v260
    %298 = vmatprep.subr.mxu0 0.0
    %299 = vmatpush1.msra.mxu0 %v261
    %300 = vmatprep.subr.mxu0 0.0
    %301 = vmatpush1.msra.mxu0 %v262
    %302 = vmatprep.subr.mxu0 0.0
    %303 = vmatpush1.msra.mxu0 0.0
    %304 = vmatprep.subr.mxu0 0.0
    %305 = vmatpush1.msra.mxu0 0.0
    %306 = vmatprep.subr.mxu0 0.0
    %307 = vmatpush1.msra.mxu0 0.0
    %308 = vmatprep.subr.mxu0 0.0
    %309 = vmatpush1.msra.mxu0 0.0
    %310 = vmatprep.subr.mxu0 0.0
    %311 = vmatpush1.msra.mxu0 0.0
    %312 = vmatprep.subr.mxu0 0.0
    %313 = vmatpush1.msra.mxu0 0.0
    %314 = vmatprep.subr.mxu0 0.0
    %315 = vmatpush1.msra.mxu0 0.0
    %316 = vmatprep.subr.mxu0 0.0
    %317 = vmatpush1.msra.mxu0 0.0
    %318 = vmatprep.subr.mxu0 0.0
    %319 = vmatpush1.msra.mxu0 0.0
    %320 = vmatprep.subr.mxu0 0.0
    %321 = vmatpush1.msra.mxu0 0.0
    %322 = vmatprep.subr.mxu0 0.0
    %323 = vmatpush1.msra.mxu0 0.0
    %324 = vmatprep.subr.mxu0 0.0
    %325 = vmatpush1.msra.mxu0 0.0
    %326 = vmatprep.subr.mxu0 0.0
    %327 = vmatpush1.msra.mxu0 0.0
    %328 = vmatprep.subr.mxu0 0.0
    %329 = vmatpush1.msra.mxu0 0.0
    %330 = vmatprep.subr.mxu0 0.0
    %331 = vmatpush1.msra.mxu0 0.0
    %332 = vmatprep.subr.mxu0 0.0
    %333 = vmatpush1.msra.mxu0 0.0
    %334 = vmatprep.mubr.f32.mxu0 0.0
    %335 = vmatmul.mubr.f32.gmra.mrb[0].mxu0 %v239
    %v336 = vpop.f32.mrb[0].mxu0
    %v337 = vadd.f32 %v268, %v336
    %v338 = vpop.f32.mrb[0].mxu0
    %339 = vmatprep.mubr.f32.mxu0 0.0
    %340 = vmatmul.mubr.f32.gmra.mrb[0].mxu0 %v244
    %v341 = vpop.f32.mrb[0].mxu0
    %v342 = vadd.f32 %v268, %v341
    %v343 = vpop.f32.mrb[0].mxu0
    %344 = vdwg.mxu0
    %vm345 = vcmask 31744
    %346 = vst.msk [vmem:[%s7] sm:$0xff] %vm345, %v337
    %347 = vst.msk [vmem:[%s7 + $0x8] sm:$0xff] %vm345, %v342
    // Predicated region
    $region38: #{tpu_custom_call.1} parent=1 // pred_check
      _
    $region39: #{tpu_custom_call.1} parent=1 // pred_check_branch
      %349 = sbr.rel (0) target = $region41
    $region40: #{tpu_custom_call.1} parent=1 // pred_region
      _
    $region41: #{tpu_custom_call.1} parent=1 // pred_fallthru
      _
    // Predicated region
    $region42: #{tpu_custom_call.1} parent=1 // pred_check
      _
    $region43: #{tpu_custom_call.1} parent=1 // pred_check_branch
      %351 = sbr.rel (0) target = $region45
    $region44: #{tpu_custom_call.1} parent=1 // pred_region
      _
    $region45: #{tpu_custom_call.1} parent=1 // pred_fallthru
      _
    %352 = vsyncpa [#allocation3], 1
    %353 = vsyncpa [#allocation5], 1

</llo_original>
